<compile_context>
chip_gen: v5e
topology: v5e:2x2
jax: 0.10.0
libtpu: 0.0.40
codegen_flags: <defaults>
</compile_context>

<pallas_src>
import jax
import jax.numpy as jnp
from jax import lax
from jax.experimental import pallas as pl
from jax.experimental.pallas import tpu as pltpu

# Model hyper-parameters (small, consistent with the module's __init__)
HIDDEN = 32
N_HEADS = 4
HEAD_DIM = HIDDEN // N_HEADS
PF_DIM = 64
SEQ = 8
BATCH = 2
LN_EPS = 1e-5       # nn.LayerNorm default
NEG_INF = -1e10     # same constant the PyTorch module uses for masking


def _layer_norm(x, gamma, beta):
    mean = jnp.mean(x, axis=-1, keepdims=True)
    var = jnp.mean((x - mean) ** 2, axis=-1, keepdims=True)
    return (x - mean) * lax.rsqrt(var + LN_EPS) * gamma + beta


def _full_spec(shape):
    n = len(shape)
    return pl.BlockSpec(shape, lambda i, _n=n: (0,) * _n)


def _make_kernel(B, S, H):
    inv_scale = 1.0 / (float(HEAD_DIM) ** 0.5)
    R = B * S  # total token rows handled in the single grid step

    def kernel(src_ref, bias_ref, hmask_ref,
               wqkv_ref, bqkv_ref, wo_ref, bo_ref,
               ln1_g_ref, ln1_b_ref,
               w1_ref, b1_ref, w2_ref, b2_ref,
               ln2_g_ref, ln2_b_ref,
               out_ref):
        # (B, S, H) -> (B*S, H): leading/sublane-aligned merge only (layout-free).
        x2 = src_ref[...].reshape(R, H)

        # Fused Q/K/V projection: one (R, H) x (H, 3H) MXU push.
        qkv = jnp.dot(x2, wqkv_ref[...], preferred_element_type=jnp.float32) + bqkv_ref[...]
        q = qkv[:, :H] * jnp.float32(inv_scale)   # fold 1/sqrt(head_dim) into q once
        k = qkv[:, H:2 * H]
        v = qkv[:, 2 * H:3 * H]

        bias = bias_ref[...]       # (R, R) additive mask (padded keys + cross-batch), host-built
        hmask = hmask_ref[...]     # (N_HEADS, H) 0/1 head-column selectors, host-built

        # Per head: full-width operands gated by a 0/1 lane mask.  Zeroed columns contribute
        # exact zeros to the contraction, so this is numerically identical to slicing each
        # head out, but with zero lane-slicing/relayout work inside the loop.
        ctx = jnp.zeros((R, H), jnp.float32)
        for h in range(N_HEADS):
            mh = hmask[h:h + 1, :]                                      # (1, H)
            # energy: contract last dims of (q*mh) and k -> (R, R); no transpose needed.
            e = lax.dot_general(q * mh, k, (((1,), (1,)), ((), ())),
                                preferred_element_type=jnp.float32)
            e = e + bias
            # numerically-stable softmax over keys; exact divide (review: no approx recip)
            e = e - jnp.max(e, axis=-1, keepdims=True)
            p = jnp.exp(e)
            p = p / jnp.sum(p, axis=-1, keepdims=True)
            # (R, H) context; only head-h columns are kept -> heads assemble in place.
            ctx = ctx + jnp.dot(p, v, preferred_element_type=jnp.float32) * mh

        # Single K=H output projection over the assembled head contexts.
        attn_out = jnp.dot(ctx, wo_ref[...], preferred_element_type=jnp.float32) + bo_ref[...]

        # residual + layer norm 1 (dropout == identity)
        y = _layer_norm(x2 + attn_out, ln1_g_ref[...], ln1_b_ref[...])

        # position-wise feed-forward on all R rows at once
        hdn = jnp.maximum(
            jnp.dot(y, w1_ref[...], preferred_element_type=jnp.float32) + b1_ref[...], 0.0)
        ff = jnp.dot(hdn, w2_ref[...], preferred_element_type=jnp.float32) + b2_ref[...]

        # residual + layer norm 2 (dropout == identity); (R,H)->(B,S,H) is sublane-aligned.
        out_ref[...] = _layer_norm(y + ff, ln2_g_ref[...], ln2_b_ref[...]).reshape(B, S, H)

    return kernel


def encoder_layer(src, src_mask, params):
    B, S, H = src.shape
    (wq, bq, wk, bk, wv, bv, wo, bo,
     ln1g, ln1b, w1, b1, w2, b2, ln2g, ln2b) = params

    # Fuse Q/K/V projection weights host-side into a single (H, 3H) matmul.
    wqkv = jnp.concatenate([wq, wk, wv], axis=1)     # (H, 3H)
    bqkv = jnp.concatenate([bq, bk, bv], axis=1)     # (1, 3H)

    # Host-precomputed additive attention bias over the full token matrix (B*S, B*S):
    #   0      where query token i and key token j are in the same batch and key j is valid
    #   -1e10  otherwise (masked key OR cross-batch pair)
    # This is what lets the kernel drop the per-batch loop entirely.
    # (At scale this (B*S)^2 bias must be built per tile, not globally.)
    tok_batch = jnp.arange(B * S, dtype=jnp.int32) // S
    same_batch = tok_batch[:, None] == tok_batch[None, :]
    key_ok = (src_mask[:, 0, :] != 0).reshape(B * S)
    attn_bias = jnp.where(same_batch & key_ok[None, :], 0.0, NEG_INF).astype(jnp.float32)

    # 0/1 per-head column selectors (N_HEADS, H): head h owns columns [h*HEAD_DIM, (h+1)*HEAD_DIM)
    head_mask = (jnp.arange(H, dtype=jnp.int32)[None, :] // HEAD_DIM
                 == jnp.arange(N_HEADS, dtype=jnp.int32)[:, None]).astype(jnp.float32)

    weights = [wqkv, bqkv, wo, bo, ln1g, ln1b, w1, b1, w2, b2, ln2g, ln2b]
    ins = [src, attn_bias, head_mask] + weights

    # Single grid step on every generation: at B=2/S=8/H=32 splitting across cores only
    # adds per-core weight DMA and pipeline overhead (review item for v7x).
    return pl.pallas_call(
        _make_kernel(B, S, H),
        out_shape=jax.ShapeDtypeStruct((B, S, H), jnp.float32),
        grid=(1,),
        in_specs=[_full_spec(a.shape) for a in ins],
        out_specs=_full_spec((B, S, H)),
        compiler_params=pltpu.CompilerParams(dimension_semantics=("arbitrary",)),
    )(*ins)


def make_params(key):
    ks = jax.random.split(key, 8)

    def lin(k, fan_in, fan_out):
        bound = 1.0 / (fan_in ** 0.5)
        kw, kb = jax.random.split(k)
        w = jax.random.uniform(kw, (fan_in, fan_out), jnp.float32, -bound, bound)
        b = jax.random.uniform(kb, (1, fan_out), jnp.float32, -bound, bound)
        return w, b

    wq, bq = lin(ks[0], HIDDEN, HIDDEN)
    wk, bk = lin(ks[1], HIDDEN, HIDDEN)
    wv, bv = lin(ks[2], HIDDEN, HIDDEN)
    wo, bo = lin(ks[3], HIDDEN, HIDDEN)
    w1, b1 = lin(ks[4], HIDDEN, PF_DIM)
    w2, b2 = lin(ks[5], PF_DIM, HIDDEN)
    # LayerNorm default init: weight=1, bias=0
    ln1_g = jnp.ones((1, HIDDEN), jnp.float32)
    ln1_b = jnp.zeros((1, HIDDEN), jnp.float32)
    ln2_g = jnp.ones((1, HIDDEN), jnp.float32)
    ln2_b = jnp.zeros((1, HIDDEN), jnp.float32)
    return [wq, bq, wk, bk, wv, bv, wo, bo,
            ln1_g, ln1_b, w1, b1, w2, b2, ln2_g, ln2_b]


def reference(src, mask, params):
    (wq, bq, wk, bk, wv, bv, wo, bo,
     ln1g, ln1b, w1, b1, w2, b2, ln2g, ln2b) = params

    def ln(x, g, bta):
        m = x.mean(-1, keepdims=True)
        v = ((x - m) ** 2).mean(-1, keepdims=True)
        return (x - m) / jnp.sqrt(v + LN_EPS) * g + bta

    B, S, H = src.shape
    q, k, v = src @ wq + bq, src @ wk + bk, src @ wv + bv
    split = lambda t: t.reshape(B, S, N_HEADS, HEAD_DIM).transpose(0, 2, 1, 3)
    qh, kh, vh = split(q), split(k), split(v)
    energy = jnp.einsum('bhqd,bhkd->bhqk', qh, kh) / jnp.sqrt(jnp.float32(HEAD_DIM))
    m4 = mask[:, None, :, :]  # (B,1,1,S)
    energy = jnp.where(m4 == 0.0, NEG_INF, energy)
    attn = jax.nn.softmax(energy, axis=-1)
    o = jnp.einsum('bhqk,bhkd->bhqd', attn, vh).transpose(0, 2, 1, 3).reshape(B, S, H)
    o = o @ wo + bo
    y = ln(src + o, ln1g, ln1b)
    f = jnp.maximum(y @ w1 + b1, 0.0) @ w2 + b2
    return ln(y + f, ln2g, ln2b)


if __name__ == "__main__":
    key = jax.random.PRNGKey(0)
    k_src, k_par = jax.random.split(key)
    src = jax.random.normal(k_src, (BATCH, SEQ, HIDDEN), jnp.float32)
    # mask: batch 0 attends to everything, batch 1 has last two keys masked out
    src_mask = jnp.ones((BATCH, 1, SEQ), jnp.float32)
    src_mask = src_mask.at[1, 0, SEQ - 2:].set(0.0)

    params = make_params(k_par)

    out = jax.block_until_ready(encoder_layer(src, src_mask, params))

    # Reference at highest matmul precision so the comparison is against exact f32.
    with jax.default_matmul_precision("highest"):
        ref = reference(src, src_mask, params)

    assert out.shape == (BATCH, SEQ, HIDDEN)
    # Kernel is exact f32 (approx reciprocal removed); observed error is ~1e-6, the bound
    # is kept at 1e-4 only for cross-generation robustness (10x tighter than before).
    err = jnp.max(jnp.abs(out - ref))
    assert jnp.allclose(out, ref, atol=1e-4, rtol=1e-4), f"max err {err}"

    print("KERNEL_OK")
</pallas_src>

<mosaic_0001>
module attributes {stable_mosaic.version = 11 : i64} {
  func.func @kernel(%arg0: i32, %arg1: memref<2x8x32xf32, #tpu.memory_space<vmem>>, %arg2: memref<16x16xf32, #tpu.memory_space<vmem>>, %arg3: memref<4x32xf32, #tpu.memory_space<vmem>>, %arg4: memref<32x96xf32, #tpu.memory_space<vmem>>, %arg5: memref<1x96xf32, #tpu.memory_space<vmem>>, %arg6: memref<32x32xf32, #tpu.memory_space<vmem>>, %arg7: memref<1x32xf32, #tpu.memory_space<vmem>>, %arg8: memref<1x32xf32, #tpu.memory_space<vmem>>, %arg9: memref<1x32xf32, #tpu.memory_space<vmem>>, %arg10: memref<32x64xf32, #tpu.memory_space<vmem>>, %arg11: memref<1x64xf32, #tpu.memory_space<vmem>>, %arg12: memref<64x32xf32, #tpu.memory_space<vmem>>, %arg13: memref<1x32xf32, #tpu.memory_space<vmem>>, %arg14: memref<1x32xf32, #tpu.memory_space<vmem>>, %arg15: memref<1x32xf32, #tpu.memory_space<vmem>>, %arg16: memref<2x8x32xf32, #tpu.memory_space<vmem>>) attributes {dimension_semantics = [#tpu.dimension_semantics<arbitrary>], iteration_bounds = array<i64: 1>, scalar_prefetch = 0 : i64, scratch_operands = 0 : i64, tpu.core_type = #tpu.core_type<tc>, window_params = [{pipeline_mode = #tpu.pipeline_mode<synchronous>, transform_indices = @transform_0, window_bounds = array<i64: 2, 8, 32>}, {pipeline_mode = #tpu.pipeline_mode<synchronous>, transform_indices = @transform_1, window_bounds = array<i64: 16, 16>}, {pipeline_mode = #tpu.pipeline_mode<synchronous>, transform_indices = @transform_2, window_bounds = array<i64: 4, 32>}, {pipeline_mode = #tpu.pipeline_mode<synchronous>, transform_indices = @transform_3, window_bounds = array<i64: 32, 96>}, {pipeline_mode = #tpu.pipeline_mode<synchronous>, transform_indices = @transform_4, window_bounds = array<i64: 1, 96>}, {pipeline_mode = #tpu.pipeline_mode<synchronous>, transform_indices = @transform_5, window_bounds = array<i64: 32, 32>}, {pipeline_mode = #tpu.pipeline_mode<synchronous>, transform_indices = @transform_6, window_bounds = array<i64: 1, 32>}, {pipeline_mode = #tpu.pipeline_mode<synchronous>, transform_indices = @transform_7, window_bounds = array<i64: 1, 32>}, {pipeline_mode = #tpu.pipeline_mode<synchronous>, transform_indices = @transform_8, window_bounds = array<i64: 1, 32>}, {pipeline_mode = #tpu.pipeline_mode<synchronous>, transform_indices = @transform_9, window_bounds = array<i64: 32, 64>}, {pipeline_mode = #tpu.pipeline_mode<synchronous>, transform_indices = @transform_10, window_bounds = array<i64: 1, 64>}, {pipeline_mode = #tpu.pipeline_mode<synchronous>, transform_indices = @transform_11, window_bounds = array<i64: 64, 32>}, {pipeline_mode = #tpu.pipeline_mode<synchronous>, transform_indices = @transform_12, window_bounds = array<i64: 1, 32>}, {pipeline_mode = #tpu.pipeline_mode<synchronous>, transform_indices = @transform_13, window_bounds = array<i64: 1, 32>}, {pipeline_mode = #tpu.pipeline_mode<synchronous>, transform_indices = @transform_14, window_bounds = array<i64: 1, 32>}, {pipeline_mode = #tpu.pipeline_mode<synchronous>, transform_indices = @transform_15, window_bounds = array<i64: 2, 8, 32>}]} {
    %c0 = arith.constant 0 : index
    %c0_0 = arith.constant 0 : index
    %c0_1 = arith.constant 0 : index
    %0 = vector.load %arg1[%c0, %c0_0, %c0_1] : memref<2x8x32xf32, #tpu.memory_space<vmem>>, vector<2x8x32xf32>
    %1 = vector.shape_cast %0 : vector<2x8x32xf32> to vector<16x32xf32>
    %c0_2 = arith.constant 0 : index
    %c0_3 = arith.constant 0 : index
    %2 = vector.load %arg4[%c0_2, %c0_3] : memref<32x96xf32, #tpu.memory_space<vmem>>, vector<32x96xf32>
    %cst = arith.constant dense<0.000000e+00> : vector<16x96xf32>
    %3 = tpu.matmul %1, %2, %cst {dimension_numbers = #tpu.dot_dimension_numbers<[1], [0], [0], [1], [0, 0, 1, 1], [], []>} : vector<16x32xf32>, vector<32x96xf32>, vector<16x96xf32> -> vector<16x96xf32>
    %c0_4 = arith.constant 0 : index
    %c0_5 = arith.constant 0 : index
    %4 = vector.load %arg5[%c0_4, %c0_5] : memref<1x96xf32, #tpu.memory_space<vmem>>, vector<1x96xf32>
    %5 = vector.broadcast %4 : vector<1x96xf32> to vector<16x96xf32>
    %6 = arith.addf %3, %5 : vector<16x96xf32>
    %7 = vector.extract_strided_slice %6 {offsets = [0, 0], sizes = [16, 32], strides = [1, 1]} : vector<16x96xf32> to vector<16x32xf32>
    %cst_6 = arith.constant 0.353553385 : f32
    %8 = vector.broadcast %cst_6 : f32 to vector<16x32xf32>
    %9 = arith.mulf %7, %8 : vector<16x32xf32>
    %10 = vector.extract_strided_slice %6 {offsets = [0, 32], sizes = [16, 32], strides = [1, 1]} : vector<16x96xf32> to vector<16x32xf32>
    %11 = vector.extract_strided_slice %6 {offsets = [0, 64], sizes = [16, 32], strides = [1, 1]} : vector<16x96xf32> to vector<16x32xf32>
    %c0_7 = arith.constant 0 : index
    %c0_8 = arith.constant 0 : index
    %12 = vector.load %arg2[%c0_7, %c0_8] : memref<16x16xf32, #tpu.memory_space<vmem>>, vector<16x16xf32>
    %c0_9 = arith.constant 0 : index
    %c0_10 = arith.constant 0 : index
    %13 = vector.load %arg3[%c0_9, %c0_10] : memref<4x32xf32, #tpu.memory_space<vmem>>, vector<4x32xf32>
    %cst_11 = arith.constant 0.000000e+00 : f32
    %14 = vector.broadcast %cst_11 : f32 to vector<16x32xf32>
    %15 = vector.extract_strided_slice %13 {offsets = [0, 0], sizes = [1, 32], strides = [1, 1]} : vector<4x32xf32> to vector<1x32xf32>
    %16 = vector.broadcast %15 : vector<1x32xf32> to vector<16x32xf32>
    %17 = arith.mulf %9, %16 : vector<16x32xf32>
    %cst_12 = arith.constant dense<0.000000e+00> : vector<16x16xf32>
    %18 = tpu.matmul %17, %10, %cst_12 {dimension_numbers = #tpu.dot_dimension_numbers<[1], [1], [0], [0], [0, 0, 1, 0], [], []>} : vector<16x32xf32>, vector<16x32xf32>, vector<16x16xf32> -> vector<16x16xf32>
    %19 = arith.addf %18, %12 : vector<16x16xf32>
    %cst_13 = arith.constant dense<0xFF800000> : vector<16xf32>
    %20 = vector.multi_reduction <maximumf>, %19, %cst_13 [1] : vector<16x16xf32> to vector<16xf32>
    %21 = vector.shape_cast %20 : vector<16xf32> to vector<16x1xf32>
    %22 = vector.broadcast %21 : vector<16x1xf32> to vector<16x16xf32>
    %23 = arith.subf %19, %22 : vector<16x16xf32>
    %24 = math.exp %23 : vector<16x16xf32>
    %cst_14 = arith.constant dense<0.000000e+00> : vector<16xf32>
    %25 = vector.multi_reduction <add>, %24, %cst_14 [1] : vector<16x16xf32> to vector<16xf32>
    %26 = vector.shape_cast %25 : vector<16xf32> to vector<16x1xf32>
    %27 = vector.broadcast %26 : vector<16x1xf32> to vector<16x16xf32>
    %28 = arith.divf %24, %27 : vector<16x16xf32>
    %cst_15 = arith.constant dense<0.000000e+00> : vector<16x32xf32>
    %29 = tpu.matmul %28, %11, %cst_15 {dimension_numbers = #tpu.dot_dimension_numbers<[1], [0], [0], [1], [0, 0, 1, 1], [], []>} : vector<16x16xf32>, vector<16x32xf32>, vector<16x32xf32> -> vector<16x32xf32>
    %30 = vector.broadcast %15 : vector<1x32xf32> to vector<16x32xf32>
    %31 = arith.mulf %29, %30 : vector<16x32xf32>
    %32 = arith.addf %14, %31 : vector<16x32xf32>
    %33 = vector.extract_strided_slice %13 {offsets = [1, 0], sizes = [1, 32], strides = [1, 1]} : vector<4x32xf32> to vector<1x32xf32>
    %34 = vector.broadcast %33 : vector<1x32xf32> to vector<16x32xf32>
    %35 = arith.mulf %9, %34 : vector<16x32xf32>
    %cst_16 = arith.constant dense<0.000000e+00> : vector<16x16xf32>
    %36 = tpu.matmul %35, %10, %cst_16 {dimension_numbers = #tpu.dot_dimension_numbers<[1], [1], [0], [0], [0, 0, 1, 0], [], []>} : vector<16x32xf32>, vector<16x32xf32>, vector<16x16xf32> -> vector<16x16xf32>
    %37 = arith.addf %36, %12 : vector<16x16xf32>
    %cst_17 = arith.constant dense<0xFF800000> : vector<16xf32>
    %38 = vector.multi_reduction <maximumf>, %37, %cst_17 [1] : vector<16x16xf32> to vector<16xf32>
    %39 = vector.shape_cast %38 : vector<16xf32> to vector<16x1xf32>
    %40 = vector.broadcast %39 : vector<16x1xf32> to vector<16x16xf32>
    %41 = arith.subf %37, %40 : vector<16x16xf32>
    %42 = math.exp %41 : vector<16x16xf32>
    %cst_18 = arith.constant dense<0.000000e+00> : vector<16xf32>
    %43 = vector.multi_reduction <add>, %42, %cst_18 [1] : vector<16x16xf32> to vector<16xf32>
    %44 = vector.shape_cast %43 : vector<16xf32> to vector<16x1xf32>
    %45 = vector.broadcast %44 : vector<16x1xf32> to vector<16x16xf32>
    %46 = arith.divf %42, %45 : vector<16x16xf32>
    %cst_19 = arith.constant dense<0.000000e+00> : vector<16x32xf32>
    %47 = tpu.matmul %46, %11, %cst_19 {dimension_numbers = #tpu.dot_dimension_numbers<[1], [0], [0], [1], [0, 0, 1, 1], [], []>} : vector<16x16xf32>, vector<16x32xf32>, vector<16x32xf32> -> vector<16x32xf32>
    %48 = vector.broadcast %33 : vector<1x32xf32> to vector<16x32xf32>
    %49 = arith.mulf %47, %48 : vector<16x32xf32>
    %50 = arith.addf %32, %49 : vector<16x32xf32>
    %51 = vector.extract_strided_slice %13 {offsets = [2, 0], sizes = [1, 32], strides = [1, 1]} : vector<4x32xf32> to vector<1x32xf32>
    %52 = vector.broadcast %51 : vector<1x32xf32> to vector<16x32xf32>
    %53 = arith.mulf %9, %52 : vector<16x32xf32>
    %cst_20 = arith.constant dense<0.000000e+00> : vector<16x16xf32>
    %54 = tpu.matmul %53, %10, %cst_20 {dimension_numbers = #tpu.dot_dimension_numbers<[1], [1], [0], [0], [0, 0, 1, 0], [], []>} : vector<16x32xf32>, vector<16x32xf32>, vector<16x16xf32> -> vector<16x16xf32>
    %55 = arith.addf %54, %12 : vector<16x16xf32>
    %cst_21 = arith.constant dense<0xFF800000> : vector<16xf32>
    %56 = vector.multi_reduction <maximumf>, %55, %cst_21 [1] : vector<16x16xf32> to vector<16xf32>
    %57 = vector.shape_cast %56 : vector<16xf32> to vector<16x1xf32>
    %58 = vector.broadcast %57 : vector<16x1xf32> to vector<16x16xf32>
    %59 = arith.subf %55, %58 : vector<16x16xf32>
    %60 = math.exp %59 : vector<16x16xf32>
    %cst_22 = arith.constant dense<0.000000e+00> : vector<16xf32>
    %61 = vector.multi_reduction <add>, %60, %cst_22 [1] : vector<16x16xf32> to vector<16xf32>
    %62 = vector.shape_cast %61 : vector<16xf32> to vector<16x1xf32>
    %63 = vector.broadcast %62 : vector<16x1xf32> to vector<16x16xf32>
    %64 = arith.divf %60, %63 : vector<16x16xf32>
    %cst_23 = arith.constant dense<0.000000e+00> : vector<16x32xf32>
    %65 = tpu.matmul %64, %11, %cst_23 {dimension_numbers = #tpu.dot_dimension_numbers<[1], [0], [0], [1], [0, 0, 1, 1], [], []>} : vector<16x16xf32>, vector<16x32xf32>, vector<16x32xf32> -> vector<16x32xf32>
    %66 = vector.broadcast %51 : vector<1x32xf32> to vector<16x32xf32>
    %67 = arith.mulf %65, %66 : vector<16x32xf32>
    %68 = arith.addf %50, %67 : vector<16x32xf32>
    %69 = vector.extract_strided_slice %13 {offsets = [3, 0], sizes = [1, 32], strides = [1, 1]} : vector<4x32xf32> to vector<1x32xf32>
    %70 = vector.broadcast %69 : vector<1x32xf32> to vector<16x32xf32>
    %71 = arith.mulf %9, %70 : vector<16x32xf32>
    %cst_24 = arith.constant dense<0.000000e+00> : vector<16x16xf32>
    %72 = tpu.matmul %71, %10, %cst_24 {dimension_numbers = #tpu.dot_dimension_numbers<[1], [1], [0], [0], [0, 0, 1, 0], [], []>} : vector<16x32xf32>, vector<16x32xf32>, vector<16x16xf32> -> vector<16x16xf32>
    %73 = arith.addf %72, %12 : vector<16x16xf32>
    %cst_25 = arith.constant dense<0xFF800000> : vector<16xf32>
    %74 = vector.multi_reduction <maximumf>, %73, %cst_25 [1] : vector<16x16xf32> to vector<16xf32>
    %75 = vector.shape_cast %74 : vector<16xf32> to vector<16x1xf32>
    %76 = vector.broadcast %75 : vector<16x1xf32> to vector<16x16xf32>
    %77 = arith.subf %73, %76 : vector<16x16xf32>
    %78 = math.exp %77 : vector<16x16xf32>
    %cst_26 = arith.constant dense<0.000000e+00> : vector<16xf32>
    %79 = vector.multi_reduction <add>, %78, %cst_26 [1] : vector<16x16xf32> to vector<16xf32>
    %80 = vector.shape_cast %79 : vector<16xf32> to vector<16x1xf32>
    %81 = vector.broadcast %80 : vector<16x1xf32> to vector<16x16xf32>
    %82 = arith.divf %78, %81 : vector<16x16xf32>
    %cst_27 = arith.constant dense<0.000000e+00> : vector<16x32xf32>
    %83 = tpu.matmul %82, %11, %cst_27 {dimension_numbers = #tpu.dot_dimension_numbers<[1], [0], [0], [1], [0, 0, 1, 1], [], []>} : vector<16x16xf32>, vector<16x32xf32>, vector<16x32xf32> -> vector<16x32xf32>
    %84 = vector.broadcast %69 : vector<1x32xf32> to vector<16x32xf32>
    %85 = arith.mulf %83, %84 : vector<16x32xf32>
    %86 = arith.addf %68, %85 : vector<16x32xf32>
    %c0_28 = arith.constant 0 : index
    %c0_29 = arith.constant 0 : index
    %87 = vector.load %arg6[%c0_28, %c0_29] : memref<32x32xf32, #tpu.memory_space<vmem>>, vector<32x32xf32>
    %cst_30 = arith.constant dense<0.000000e+00> : vector<16x32xf32>
    %88 = tpu.matmul %86, %87, %cst_30 {dimension_numbers = #tpu.dot_dimension_numbers<[1], [0], [0], [1], [0, 0, 1, 1], [], []>} : vector<16x32xf32>, vector<32x32xf32>, vector<16x32xf32> -> vector<16x32xf32>
    %c0_31 = arith.constant 0 : index
    %c0_32 = arith.constant 0 : index
    %89 = vector.load %arg7[%c0_31, %c0_32] : memref<1x32xf32, #tpu.memory_space<vmem>>, vector<1x32xf32>
    %90 = vector.broadcast %89 : vector<1x32xf32> to vector<16x32xf32>
    %91 = arith.addf %88, %90 : vector<16x32xf32>
    %92 = arith.addf %1, %91 : vector<16x32xf32>
    %c0_33 = arith.constant 0 : index
    %c0_34 = arith.constant 0 : index
    %93 = vector.load %arg8[%c0_33, %c0_34] : memref<1x32xf32, #tpu.memory_space<vmem>>, vector<1x32xf32>
    %c0_35 = arith.constant 0 : index
    %c0_36 = arith.constant 0 : index
    %94 = vector.load %arg9[%c0_35, %c0_36] : memref<1x32xf32, #tpu.memory_space<vmem>>, vector<1x32xf32>
    %cst_37 = arith.constant dense<0.000000e+00> : vector<16xf32>
    %95 = vector.multi_reduction <add>, %92, %cst_37 [1] : vector<16x32xf32> to vector<16xf32>
    %96 = vector.shape_cast %95 : vector<16xf32> to vector<16x1xf32>
    %cst_38 = arith.constant 3.200000e+01 : f32
    %97 = vector.broadcast %cst_38 : f32 to vector<16x1xf32>
    %98 = arith.divf %96, %97 : vector<16x1xf32>
    %99 = vector.broadcast %98 : vector<16x1xf32> to vector<16x32xf32>
    %100 = arith.subf %92, %99 : vector<16x32xf32>
    %101 = arith.mulf %100, %100 : vector<16x32xf32>
    %cst_39 = arith.constant dense<0.000000e+00> : vector<16xf32>
    %102 = vector.multi_reduction <add>, %101, %cst_39 [1] : vector<16x32xf32> to vector<16xf32>
    %103 = vector.shape_cast %102 : vector<16xf32> to vector<16x1xf32>
    %cst_40 = arith.constant 3.200000e+01 : f32
    %104 = vector.broadcast %cst_40 : f32 to vector<16x1xf32>
    %105 = arith.divf %103, %104 : vector<16x1xf32>
    %106 = vector.broadcast %98 : vector<16x1xf32> to vector<16x32xf32>
    %107 = arith.subf %92, %106 : vector<16x32xf32>
    %cst_41 = arith.constant 9.99999974E-6 : f32
    %108 = vector.broadcast %cst_41 : f32 to vector<16x1xf32>
    %109 = arith.addf %105, %108 : vector<16x1xf32>
    %110 = math.rsqrt %109 : vector<16x1xf32>
    %111 = vector.broadcast %110 : vector<16x1xf32> to vector<16x32xf32>
    %112 = arith.mulf %107, %111 : vector<16x32xf32>
    %113 = vector.broadcast %93 : vector<1x32xf32> to vector<16x32xf32>
    %114 = arith.mulf %112, %113 : vector<16x32xf32>
    %115 = vector.broadcast %94 : vector<1x32xf32> to vector<16x32xf32>
    %116 = arith.addf %114, %115 : vector<16x32xf32>
    %c0_42 = arith.constant 0 : index
    %c0_43 = arith.constant 0 : index
    %117 = vector.load %arg10[%c0_42, %c0_43] : memref<32x64xf32, #tpu.memory_space<vmem>>, vector<32x64xf32>
    %cst_44 = arith.constant dense<0.000000e+00> : vector<16x64xf32>
    %118 = tpu.matmul %116, %117, %cst_44 {dimension_numbers = #tpu.dot_dimension_numbers<[1], [0], [0], [1], [0, 0, 1, 1], [], []>} : vector<16x32xf32>, vector<32x64xf32>, vector<16x64xf32> -> vector<16x64xf32>
    %c0_45 = arith.constant 0 : index
    %c0_46 = arith.constant 0 : index
    %119 = vector.load %arg11[%c0_45, %c0_46] : memref<1x64xf32, #tpu.memory_space<vmem>>, vector<1x64xf32>
    %120 = vector.broadcast %119 : vector<1x64xf32> to vector<16x64xf32>
    %121 = arith.addf %118, %120 : vector<16x64xf32>
    %cst_47 = arith.constant 0.000000e+00 : f32
    %122 = vector.broadcast %cst_47 : f32 to vector<16x64xf32>
    %123 = arith.maximumf %121, %122 : vector<16x64xf32>
    %c0_48 = arith.constant 0 : index
    %c0_49 = arith.constant 0 : index
    %124 = vector.load %arg12[%c0_48, %c0_49] : memref<64x32xf32, #tpu.memory_space<vmem>>, vector<64x32xf32>
    %cst_50 = arith.constant dense<0.000000e+00> : vector<16x32xf32>
    %125 = tpu.matmul %123, %124, %cst_50 {dimension_numbers = #tpu.dot_dimension_numbers<[1], [0], [0], [1], [0, 0, 1, 1], [], []>} : vector<16x64xf32>, vector<64x32xf32>, vector<16x32xf32> -> vector<16x32xf32>
    %c0_51 = arith.constant 0 : index
    %c0_52 = arith.constant 0 : index
    %126 = vector.load %arg13[%c0_51, %c0_52] : memref<1x32xf32, #tpu.memory_space<vmem>>, vector<1x32xf32>
    %127 = vector.broadcast %126 : vector<1x32xf32> to vector<16x32xf32>
    %128 = arith.addf %125, %127 : vector<16x32xf32>
    %129 = arith.addf %116, %128 : vector<16x32xf32>
    %c0_53 = arith.constant 0 : index
    %c0_54 = arith.constant 0 : index
    %130 = vector.load %arg14[%c0_53, %c0_54] : memref<1x32xf32, #tpu.memory_space<vmem>>, vector<1x32xf32>
    %c0_55 = arith.constant 0 : index
    %c0_56 = arith.constant 0 : index
    %131 = vector.load %arg15[%c0_55, %c0_56] : memref<1x32xf32, #tpu.memory_space<vmem>>, vector<1x32xf32>
    %cst_57 = arith.constant dense<0.000000e+00> : vector<16xf32>
    %132 = vector.multi_reduction <add>, %129, %cst_57 [1] : vector<16x32xf32> to vector<16xf32>
    %133 = vector.shape_cast %132 : vector<16xf32> to vector<16x1xf32>
    %cst_58 = arith.constant 3.200000e+01 : f32
    %134 = vector.broadcast %cst_58 : f32 to vector<16x1xf32>
    %135 = arith.divf %133, %134 : vector<16x1xf32>
    %136 = vector.broadcast %135 : vector<16x1xf32> to vector<16x32xf32>
    %137 = arith.subf %129, %136 : vector<16x32xf32>
    %138 = arith.mulf %137, %137 : vector<16x32xf32>
    %cst_59 = arith.constant dense<0.000000e+00> : vector<16xf32>
    %139 = vector.multi_reduction <add>, %138, %cst_59 [1] : vector<16x32xf32> to vector<16xf32>
    %140 = vector.shape_cast %139 : vector<16xf32> to vector<16x1xf32>
    %cst_60 = arith.constant 3.200000e+01 : f32
    %141 = vector.broadcast %cst_60 : f32 to vector<16x1xf32>
    %142 = arith.divf %140, %141 : vector<16x1xf32>
    %143 = vector.broadcast %135 : vector<16x1xf32> to vector<16x32xf32>
    %144 = arith.subf %129, %143 : vector<16x32xf32>
    %cst_61 = arith.constant 9.99999974E-6 : f32
    %145 = vector.broadcast %cst_61 : f32 to vector<16x1xf32>
    %146 = arith.addf %142, %145 : vector<16x1xf32>
    %147 = math.rsqrt %146 : vector<16x1xf32>
    %148 = vector.broadcast %147 : vector<16x1xf32> to vector<16x32xf32>
    %149 = arith.mulf %144, %148 : vector<16x32xf32>
    %150 = vector.broadcast %130 : vector<1x32xf32> to vector<16x32xf32>
    %151 = arith.mulf %149, %150 : vector<16x32xf32>
    %152 = vector.broadcast %131 : vector<1x32xf32> to vector<16x32xf32>
    %153 = arith.addf %151, %152 : vector<16x32xf32>
    %154 = vector.shape_cast %153 : vector<16x32xf32> to vector<2x8x32xf32>
    %c0_62 = arith.constant 0 : index
    %c0_63 = arith.constant 0 : index
    %c0_64 = arith.constant 0 : index
    %155 = vector.load %arg16[%c0_62, %c0_63, %c0_64] : memref<2x8x32xf32, #tpu.memory_space<vmem>>, vector<2x8x32xf32>
    tpu.vector_store %arg16[%c0_62, %c0_63, %c0_64], %154 {strides = array<i32>} : memref<2x8x32xf32, #tpu.memory_space<vmem>>, vector<2x8x32xf32>,
    return
  }
  func.func @transform_0(%arg0: i32) -> (i32, i32, i32) {
    %c0_i32 = arith.constant 0 : i32
    %c0_i32_0 = arith.constant 0 : i32
    %c0_i32_1 = arith.constant 0 : i32
    %c0_i32_2 = arith.constant 0 : i32
    return %c0_i32, %c0_i32_0, %c0_i32_1 : i32, i32, i32
  }
  func.func @transform_1(%arg0: i32) -> (i32, i32) {
    %c0_i32 = arith.constant 0 : i32
    %c0_i32_0 = arith.constant 0 : i32
    %c0_i32_1 = arith.constant 0 : i32
    return %c0_i32, %c0_i32_0 : i32, i32
  }
  func.func @transform_2(%arg0: i32) -> (i32, i32) {
    %c0_i32 = arith.constant 0 : i32
    %c0_i32_0 = arith.constant 0 : i32
    %c0_i32_1 = arith.constant 0 : i32
    return %c0_i32, %c0_i32_0 : i32, i32
  }
  func.func @transform_3(%arg0: i32) -> (i32, i32) {
    %c0_i32 = arith.constant 0 : i32
    %c0_i32_0 = arith.constant 0 : i32
    %c0_i32_1 = arith.constant 0 : i32
    return %c0_i32, %c0_i32_0 : i32, i32
  }
  func.func @transform_4(%arg0: i32) -> (i32, i32) {
    %c0_i32 = arith.constant 0 : i32
    %c0_i32_0 = arith.constant 0 : i32
    %c0_i32_1 = arith.constant 0 : i32
    return %c0_i32, %c0_i32_0 : i32, i32
  }
  func.func @transform_5(%arg0: i32) -> (i32, i32) {
    %c0_i32 = arith.constant 0 : i32
    %c0_i32_0 = arith.constant 0 : i32
    %c0_i32_1 = arith.constant 0 : i32
    return %c0_i32, %c0_i32_0 : i32, i32
  }
  func.func @transform_6(%arg0: i32) -> (i32, i32) {
    %c0_i32 = arith.constant 0 : i32
    %c0_i32_0 = arith.constant 0 : i32
    %c0_i32_1 = arith.constant 0 : i32
    return %c0_i32, %c0_i32_0 : i32, i32
  }
  func.func @transform_7(%arg0: i32) -> (i32, i32) {
    %c0_i32 = arith.constant 0 : i32
    %c0_i32_0 = arith.constant 0 : i32
    %c0_i32_1 = arith.constant 0 : i32
    return %c0_i32, %c0_i32_0 : i32, i32
  }
  func.func @transform_8(%arg0: i32) -> (i32, i32) {
    %c0_i32 = arith.constant 0 : i32
    %c0_i32_0 = arith.constant 0 : i32
    %c0_i32_1 = arith.constant 0 : i32
    return %c0_i32, %c0_i32_0 : i32, i32
  }
  func.func @transform_9(%arg0: i32) -> (i32, i32) {
    %c0_i32 = arith.constant 0 : i32
    %c0_i32_0 = arith.constant 0 : i32
    %c0_i32_1 = arith.constant 0 : i32
    return %c0_i32, %c0_i32_0 : i32, i32
  }
  func.func @transform_10(%arg0: i32) -> (i32, i32) {
    %c0_i32 = arith.constant 0 : i32
    %c0_i32_0 = arith.constant 0 : i32
    %c0_i32_1 = arith.constant 0 : i32
    return %c0_i32, %c0_i32_0 : i32, i32
  }
  func.func @transform_11(%arg0: i32) -> (i32, i32) {
    %c0_i32 = arith.constant 0 : i32
    %c0_i32_0 = arith.constant 0 : i32
    %c0_i32_1 = arith.constant 0 : i32
    return %c0_i32, %c0_i32_0 : i32, i32
  }
  func.func @transform_12(%arg0: i32) -> (i32, i32) {
    %c0_i32 = arith.constant 0 : i32
    %c0_i32_0 = arith.constant 0 : i32
    %c0_i32_1 = arith.constant 0 : i32
    return %c0_i32, %c0_i32_0 : i32, i32
  }
  func.func @transform_13(%arg0: i32) -> (i32, i32) {
    %c0_i32 = arith.constant 0 : i32
    %c0_i32_0 = arith.constant 0 : i32
    %c0_i32_1 = arith.constant 0 : i32
    return %c0_i32, %c0_i32_0 : i32, i32
  }
  func.func @transform_14(%arg0: i32) -> (i32, i32) {
    %c0_i32 = arith.constant 0 : i32
    %c0_i32_0 = arith.constant 0 : i32
    %c0_i32_1 = arith.constant 0 : i32
    return %c0_i32, %c0_i32_0 : i32, i32
  }
  func.func @transform_15(%arg0: i32) -> (i32, i32, i32) {
    %c0_i32 = arith.constant 0 : i32
    %c0_i32_0 = arith.constant 0 : i32
    %c0_i32_1 = arith.constant 0 : i32
    %c0_i32_2 = arith.constant 0 : i32
    return %c0_i32, %c0_i32_0, %c0_i32_1 : i32, i32, i32
  }
}

</mosaic_0001>

<llo_original>
// kernel: tpu_custom_call.1
$region0: #{tpu_custom_call.1}
  #allocation0 [shape = 'u32[]', space=smem, size = 0x4, offset = 0x4, fixed_abs, tag = 'smem constant byte address 0x4 - core index']
  #allocation1 [shape = 'u32[72,128]{1,0:T(1,128)}', space=vmem, size = 0x9000, scoped, tag = 'internal scratch']
  %s0 = inlined_call_operand.hbm [shape: f32[2,8,32], index: 0, kind: input, shape index: {}]
  %s1 = inlined_call_operand.hbm [shape: f32[16,16], index: 1, kind: input, shape index: {}]
  %s2 = inlined_call_operand.hbm [shape: f32[4,32], index: 2, kind: input, shape index: {}]
  %s3 = inlined_call_operand.vmem [shape: f32[32,96], index: 3, kind: input, shape index: {}]
  %s4 = inlined_call_operand.vmem [shape: f32[1,96], index: 4, kind: input, shape index: {}]
  %s5 = inlined_call_operand.vmem [shape: f32[32,32], index: 5, kind: input, shape index: {}]
  %s6 = inlined_call_operand.vmem [shape: f32[1,32], index: 6, kind: input, shape index: {}]
  %s7 = inlined_call_operand.vmem [shape: f32[1,32], index: 7, kind: input, shape index: {}]
  %s8 = inlined_call_operand.vmem [shape: f32[1,32], index: 8, kind: input, shape index: {}]
  %s9 = inlined_call_operand.vmem [shape: f32[32,64], index: 9, kind: input, shape index: {}]
  %s10 = inlined_call_operand.vmem [shape: f32[1,64], index: 10, kind: input, shape index: {}]
  %s11 = inlined_call_operand.vmem [shape: f32[64,32], index: 11, kind: input, shape index: {}]
  %s12 = inlined_call_operand.vmem [shape: f32[1,32], index: 12, kind: input, shape index: {}]
  %s13 = inlined_call_operand.vmem [shape: f32[1,32], index: 13, kind: input, shape index: {}]
  %s14 = inlined_call_operand.vmem [shape: f32[1,32], index: 14, kind: input, shape index: {}]
  %s15 = inlined_call_operand.hbm [shape: f32[2,8,32], index: 15, kind: output, shape index: {}]
  %s16 = sld [smem:[#allocation0]]
  $region82: #{tpu_custom_call.1} parent=0
    _
  %s18 = ssub.s32 1, %s16
  %s19 = scalar_select 0, %s18, %s16
  $region1: #{tpu_custom_call.1} parent=0
    #allocation2 [shape = 'u8[8192]{0}', space=vmem, size = 0x2000, scoped, tag = 'input window, operand 0, single buffered']
    #allocation3 [shape = 's32[1]{0}', space=sflag, size = 0x4, scoped, tag = 'scoped memory for tpu_custom_call.1']
    #allocation4 [shape = 's32[1]{0}', space=sflag, size = 0x4, scoped, tag = 'scoped memory for tpu_custom_call.1']
    #allocation5 [shape = 'u8[8192]{0}', space=vmem, size = 0x2000, scoped, tag = 'input window, operand 1, single buffered']
    #allocation6 [shape = 's32[1]{0}', space=sflag, size = 0x4, scoped, tag = 'scoped memory for tpu_custom_call.1']
    #allocation7 [shape = 'u8[2048]{0}', space=vmem, size = 0x800, scoped, tag = 'input window, operand 2, single buffered']
    #allocation8 [shape = 'u8[8192]{0}', space=vmem, size = 0x2000, scoped, tag = 'output window, operand 0, single buffered']
    %20 = vsyncpa [#allocation3], 0
    %21 = vsyncpa [#allocation6], 0
    %22 = vsyncpa [#allocation4], 0
    // Predicated region
    $region2: #{tpu_custom_call.1} parent=1 // pred_check
      _
    $region3: #{tpu_custom_call.1} parent=1 // pred_check_branch
      %24 = sbr.rel (0) target = $region5
    $region4: #{tpu_custom_call.1} parent=1 // pred_region
      %26 = vsyncadd [#allocation3], 0
      %s27 = sshll.u32 %s0, 4
      %s28 = int_to_ptr.hbm [resolvable:$true] %s27
      %s29 = sshll.u32 [#allocation2], 4
      %s30 = int_to_ptr.vmem [resolvable:$true] %s29
      %35 = dma.hbm_to_vmem [thread:$0]  %s28, 256, %s30, [#allocation3], 128, 128, 8
    $region5: #{tpu_custom_call.1} parent=1 // pred_fallthru
      _
    // Predicated region
    $region6: #{tpu_custom_call.1} parent=1 // pred_check
      _
    $region7: #{tpu_custom_call.1} parent=1 // pred_check_branch
      %37 = sbr.rel (0) target = $region9
    $region8: #{tpu_custom_call.1} parent=1 // pred_region
      %39 = vsyncadd [#allocation6], 0
      %s40 = sshll.u32 %s1, 4
      %s41 = int_to_ptr.hbm [resolvable:$true] %s40
      %s42 = sshll.u32 [#allocation5], 4
      %s43 = int_to_ptr.vmem [resolvable:$true] %s42
      %48 = dma.hbm_to_vmem [thread:$0]  %s41, 256, %s43, [#allocation6], 128, 128, 8
    $region9: #{tpu_custom_call.1} parent=1 // pred_fallthru
      _
    // Predicated region
    $region10: #{tpu_custom_call.1} parent=1 // pred_check
      _
    $region11: #{tpu_custom_call.1} parent=1 // pred_check_branch
      %50 = sbr.rel (0) target = $region13
    $region12: #{tpu_custom_call.1} parent=1 // pred_region
      %52 = vsyncadd [#allocation6], 0
      %s54 = sshll.u32 %s2, 4
      %s55 = int_to_ptr.hbm [resolvable:$true] %s54
      %s56 = sshll.u32 [#allocation7], 4
      %s57 = int_to_ptr.vmem [resolvable:$true] %s56
      %59 = dma.hbm_to_vmem [thread:$0]  %s55, 64, %s57, [#allocation6]
    $region13: #{tpu_custom_call.1} parent=1 // pred_fallthru
      _
    // Predicated region
    $region14: #{tpu_custom_call.1} parent=1 // pred_check
      _
    $region15: #{tpu_custom_call.1} parent=1 // pred_check_branch
      %61 = sbr.rel (0) target = $region17
    $region16: #{tpu_custom_call.1} parent=1 // pred_region
      _
    $region17: #{tpu_custom_call.1} parent=1 // pred_fallthru
      _
    // Predicated region
    $region18: #{tpu_custom_call.1} parent=1 // pred_check
      _
    $region19: #{tpu_custom_call.1} parent=1 // pred_check_branch
      %63 = sbr.rel (0) target = $region21
    $region20: #{tpu_custom_call.1} parent=1 // pred_region
      _
    $region21: #{tpu_custom_call.1} parent=1 // pred_fallthru
      _
    // Predicated region
    $region22: #{tpu_custom_call.1} parent=1 // pred_check
      _
    $region23: #{tpu_custom_call.1} parent=1 // pred_check_branch
      %65 = sbr.rel (0) target = $region25
    $region24: #{tpu_custom_call.1} parent=1 // pred_region
      _
    $region25: #{tpu_custom_call.1} parent=1 // pred_fallthru
      _
    // Predicated region
    $region26: #{tpu_custom_call.1} parent=1 // pred_check
      _
    $region27: #{tpu_custom_call.1} parent=1 // pred_check_branch
      %67 = sbr.rel (0) target = $region29
    $region28: #{tpu_custom_call.1} parent=1 // pred_region
      _
    $region29: #{tpu_custom_call.1} parent=1 // pred_fallthru
      _
    // Predicated region
    $region30: #{tpu_custom_call.1} parent=1 // pred_check
      _
    $region31: #{tpu_custom_call.1} parent=1 // pred_check_branch
      %69 = sbr.rel (0) target = $region33
    $region32: #{tpu_custom_call.1} parent=1 // pred_region
      _
    $region33: #{tpu_custom_call.1} parent=1 // pred_fallthru
      _
    // Predicated region
    $region34: #{tpu_custom_call.1} parent=1 // pred_check
      _
    $region35: #{tpu_custom_call.1} parent=1 // pred_check_branch
      %71 = sbr.rel (0) target = $region37
    $region36: #{tpu_custom_call.1} parent=1 // pred_region
      _
    $region37: #{tpu_custom_call.1} parent=1 // pred_fallthru
      _
    // Predicated region
    $region38: #{tpu_custom_call.1} parent=1 // pred_check
      _
    $region39: #{tpu_custom_call.1} parent=1 // pred_check_branch
      %73 = sbr.rel (0) target = $region41
    $region40: #{tpu_custom_call.1} parent=1 // pred_region
      _
    $region41: #{tpu_custom_call.1} parent=1 // pred_fallthru
      _
    // Predicated region
    $region42: #{tpu_custom_call.1} parent=1 // pred_check
      _
    $region43: #{tpu_custom_call.1} parent=1 // pred_check_branch
      %75 = sbr.rel (0) target = $region45
    $region44: #{tpu_custom_call.1} parent=1 // pred_region
      _
    $region45: #{tpu_custom_call.1} parent=1 // pred_fallthru
      _
    // Predicated region
    $region46: #{tpu_custom_call.1} parent=1 // pred_check
      _
    $region47: #{tpu_custom_call.1} parent=1 // pred_check_branch
      %77 = sbr.rel (0) target = $region49
    $region48: #{tpu_custom_call.1} parent=1 // pred_region
      _
    $region49: #{tpu_custom_call.1} parent=1 // pred_fallthru
      _
    // Predicated region
    $region50: #{tpu_custom_call.1} parent=1 // pred_check
      _
    $region51: #{tpu_custom_call.1} parent=1 // pred_check_branch
      %79 = sbr.rel (0) target = $region53
    $region52: #{tpu_custom_call.1} parent=1 // pred_region
      _
    $region53: #{tpu_custom_call.1} parent=1 // pred_fallthru
      _
    // Predicated region
    $region54: #{tpu_custom_call.1} parent=1 // pred_check
      _
    $region55: #{tpu_custom_call.1} parent=1 // pred_check_branch
      %81 = sbr.rel (0) target = $region57
    $region56: #{tpu_custom_call.1} parent=1 // pred_region
      _
    $region57: #{tpu_custom_call.1} parent=1 // pred_fallthru
      _
    // Predicated region
    $region58: #{tpu_custom_call.1} parent=1 // pred_check
      _
    $region59: #{tpu_custom_call.1} parent=1 // pred_check_branch
      %83 = sbr.rel (0) target = $region61
    $region60: #{tpu_custom_call.1} parent=1 // pred_region
      _
    $region61: #{tpu_custom_call.1} parent=1 // pred_fallthru
      _
    // Predicated region
    $region62: #{tpu_custom_call.1} parent=1 // pred_check
      _
    $region63: #{tpu_custom_call.1} parent=1 // pred_check_branch
      %85 = sbr.rel (0) target = $region65
    $region64: #{tpu_custom_call.1} parent=1 // pred_region
      %87 = dma.done [#allocation3], 256
    $region65: #{tpu_custom_call.1} parent=1 // pred_fallthru
      _
    // Predicated region
    $region66: #{tpu_custom_call.1} parent=1 // pred_check
      _
    $region67: #{tpu_custom_call.1} parent=1 // pred_check_branch
      %89 = sbr.rel (0) target = $region69
    $region68: #{tpu_custom_call.1} parent=1 // pred_region
      %91 = dma.done [#allocation6], 256
    $region69: #{tpu_custom_call.1} parent=1 // pred_fallthru
      _
    // Predicated region
    $region70: #{tpu_custom_call.1} parent=1 // pred_check
      _
    $region71: #{tpu_custom_call.1} parent=1 // pred_check_branch
      %93 = sbr.rel (0) target = $region73
    $region72: #{tpu_custom_call.1} parent=1 // pred_region
      %95 = dma.done [#allocation6], 64
    $region73: #{tpu_custom_call.1} parent=1 // pred_fallthru
      _
    %v96 = vld [vmem:[#allocation2] sm:$0xff]
    %v97 = vld [vmem:[#allocation2 + $0x8] sm:$0xff]
    %v98 = vld [vmem:[%s3] sm:$0xff]
    %v99 = vld [vmem:[%s3 + $0x8] sm:$0xff]
    %v100 = vld [vmem:[%s3 + $0x10] sm:$0xff]
    %v101 = vld [vmem:[%s3 + $0x18] sm:$0xff]
    %v102 = vld [vmem:[%s4] sm:$0x1]
    %v104 = vperm.slane %v102, 0
    %vm106 = vcmask 261120
    %v108 = vsel %vm106, %v96, 0
    %v111 = vsel %vm106, %v97, 0
    %113 = vmatpush.msra.mxu0 0.0
    %114 = vmatpush.msra.mxu0 0.0
    %115 = vmatpush.msra.mxu0 0.0
    %116 = vmatpush.msra.mxu0 0.0
    %117 = vmatpush.msra.mxu0 0.0
    %118 = vmatpush.msra.mxu0 0.0
    %119 = vmatpush.msra.mxu0 0.0
    %120 = vmatpush.msra.mxu0 0.0
    %121 = vmatpush.msra.mxu0 0.0
    %122 = vmatpush.msra.mxu0 0.0
    %123 = vmatpush.msra.mxu0 0.0
    %124 = vmatpush.msra.mxu0 0.0
    %125 = vmatpush.msra.mxu0 %v101
    %126 = vmatpush.msra.mxu0 %v100
    %127 = vmatpush.msra.mxu0 %v99
    %128 = vmatpush.msra.mxu0 %v98
    %129 = vmatmul.f32.gmra.mxu0 %v108
    %v130 = vpop.f32.mrf.mxu0
    %v131 = vadd.f32 %v104, %v130
    %132 = vmatmul.f32.gmra.mxu0 %v111
    %v133 = vpop.f32.mrf.mxu0
    %v134 = vadd.f32 %v104, %v133
    %135 = vdwg.mxu0
    %v136 = vmul.f32 %v131, 0.35355338
    %v137 = vmul.f32 %v134, 0.35355338
    %v138 = vld [vmem:[#allocation5] sm:$0xff]
    %v139 = vld [vmem:[#allocation5 + $0x8] sm:$0xff]
    %v140 = vld [vmem:[#allocation7] sm:$0xf]
    %v141 = vperm.slane %v140, 0
    %v142 = vmul.f32 %v136, %v141
    %v143 = vmul.f32 %v137, %v141
    %146 = vrot.lane.b32.xlu0 %v131, 96
    %v147 = vpop.permute.xlu0 %146
    %148 = vrot.lane.b32.xlu0 %v134, 96
    %v149 = vpop.permute.xlu0 %148
    %v151 = vsel %vm106, %v142, 0
    %v154 = vsel %vm106, %v143, 0
    %v156 = vsel %vm106, %v147, 0
    %v158 = vsel %vm106, %v149, 0
    %160 = vmatpush.xpose.msra.mxu0 0.0
    %161 = vmatpush.xpose.msra.mxu0 0.0
    %162 = vmatpush.xpose.msra.mxu0 0.0
    %163 = vmatpush.xpose.msra.mxu0 0.0
    %164 = vmatpush.xpose.msra.mxu0 0.0
    %165 = vmatpush.xpose.msra.mxu0 0.0
    %166 = vmatpush.xpose.msra.mxu0 0.0
    %167 = vmatpush.xpose.msra.mxu0 0.0
    %168 = vmatpush.xpose.msra.mxu0 0.0
    %169 = vmatpush.xpose.msra.mxu0 0.0
    %170 = vmatpush.xpose.msra.mxu0 0.0
    %171 = vmatpush.xpose.msra.mxu0 0.0
    %172 = vmatpush.xpose.msra.mxu0 0.0
    %173 = vmatpush.xpose.msra.mxu0 0.0
    %174 = vmatpush.xpose.msra.mxu0 %v158
    %175 = vmatpush.xpose.msra.mxu0 %v156
    %176 = vmatmul.f32.gmra.mxu0 %v151
    %v177 = vpop.f32.mrf.mxu0
    %v178 = vadd.f32 %v138, %v177
    %179 = vmatmul.f32.gmra.mxu0 %v154
    %v180 = vpop.f32.mrf.mxu0
    %v181 = vadd.f32 %v139, %v180
    %182 = vdwg.mxu0
    %vm183 = vcmask 130048
    %v184 = vsel %vm183, %v178, -inf
    %185 = vmax.xlane.f32.xlu0 %v184
    %v186 = vpop.xlane.xlu0 %185
    %v187 = vsel %vm183, %v181, -inf
    %188 = vmax.xlane.f32.xlu0 %v187
    %v189 = vpop.xlane.xlu0 %188
    %v190 = vsub.f32 %v178, %v186
    %v191 = vsub.f32 %v181, %v189
    %v192 = vmul.f32 %v190, 1.442695
    %v193 = vpow.pop %v192
    %v194 = vmul.f32 %v191, 1.442695
    %v195 = vpow.pop %v194
    %v196 = vsel %vm183, %v193, 0.0
    %197 = vadd.xlane.f32.xlu0 %v196
    %v198 = vpop.xlane.xlu0 %197
    %v199 = vsel %vm183, %v195, 0.0
    %200 = vadd.xlane.f32.xlu0 %v199
    %v201 = vpop.xlane.xlu0 %200
    %v202 = vrcp.pop %v198
    %v203 = vmul.f32 %v198, %v202
    %v204 = vsub.f32 1.0, %v203
    %v205 = vmul.f32 %v202, %v204
    %v206 = vadd.f32 %v202, %v205
    %vm207 = vweird.f32 %v198
    %vm208 = vweird.f32 %v202
    %vm209 = vmor %vm207, %vm208
    %v210 = vsel %vm209, %v202, %v206
    %v211 = vand.u32 2147483647, %v198
    %vm212 = vcmp.eq.f32.partialorder %v211, 8.507059e+37
    %v213 = vand.u32 %v198, 2147483648
    %v214 = vor.u32 1.1754944e-38, %v213
    %v215 = vsel %vm212, %v214, %v210
    %v216 = vmul.f32 %v193, %v215
    %v217 = vrcp.pop %v201
    %v218 = vmul.f32 %v201, %v217
    %v219 = vsub.f32 1.0, %v218
    %v220 = vmul.f32 %v217, %v219
    %v221 = vadd.f32 %v217, %v220
    %vm222 = vweird.f32 %v201
    %vm223 = vweird.f32 %v217
    %vm224 = vmor %vm222, %vm223
    %v225 = vsel %vm224, %v217, %v221
    %v226 = vand.u32 2147483647, %v201
    %vm227 = vcmp.eq.f32.partialorder %v226, 8.507059e+37
    %v228 = vand.u32 %v201, 2147483648
    %v229 = vor.u32 1.1754944e-38, %v228
    %v230 = vsel %vm227, %v229, %v225
    %v231 = vmul.f32 %v195, %v230
    %232 = vrot.lane.b32.xlu0 %v131, 64
    %v233 = vpop.permute.xlu0 %232
    %234 = vrot.lane.b32.xlu0 %v134, 64
    %v235 = vpop.permute.xlu0 %234
    %v239 = vsel %vm183, %v216, 0
    %v242 = vsel %vm183, %v231, 0
    %244 = vmatpush.msra.mxu0 0.0
    %245 = vmatpush.msra.mxu0 0.0
    %246 = vmatpush.msra.mxu0 0.0
    %247 = vmatpush.msra.mxu0 0.0
    %248 = vmatpush.msra.mxu0 0.0
    %249 = vmatpush.msra.mxu0 0.0
    %250 = vmatpush.msra.mxu0 0.0
    %251 = vmatpush.msra.mxu0 0.0
    %252 = vmatpush.msra.mxu0 0.0
    %253 = vmatpush.msra.mxu0 0.0
    %254 = vmatpush.msra.mxu0 0.0
    %255 = vmatpush.msra.mxu0 0.0
    %256 = vmatpush.msra.mxu0 0.0
    %257 = vmatpush.msra.mxu0 0.0
    %258 = vmatpush.msra.mxu0 %v235
    %259 = vmatpush.msra.mxu0 %v233
    %260 = vmatmul.f32.gmra.mxu0 %v239
    %v261 = vpop.f32.mrf.mxu0
    %v262 = vadd.f32 0.0, %v261
    %263 = vmatmul.f32.gmra.mxu0 %v242
    %v264 = vpop.f32.mrf.mxu0
    %v265 = vadd.f32 0.0, %v264
    %266 = vdwg.mxu0
    %v267 = vmul.f32 %v262, %v141
    %v268 = vmul.f32 %v265, %v141
    %v269 = vadd.f32 %v267, 0.0
    %v270 = vadd.f32 %v268, 0.0
    %v271 = vperm.slane %v140, 1
    %v272 = vmul.f32 %v136, %v271
    %v273 = vmul.f32 %v137, %v271
    %v275 = vsel %vm106, %v272, 0
    %v278 = vsel %vm106, %v273, 0
    %280 = vmatpush.xpose.msra.mxu0 0.0
    %281 = vmatpush.xpose.msra.mxu0 0.0
    %282 = vmatpush.xpose.msra.mxu0 0.0
    %283 = vmatpush.xpose.msra.mxu0 0.0
    %284 = vmatpush.xpose.msra.mxu0 0.0
    %285 = vmatpush.xpose.msra.mxu0 0.0
    %286 = vmatpush.xpose.msra.mxu0 0.0
    %287 = vmatpush.xpose.msra.mxu0 0.0
    %288 = vmatpush.xpose.msra.mxu0 0.0
    %289 = vmatpush.xpose.msra.mxu0 0.0
    %290 = vmatpush.xpose.msra.mxu0 0.0
    %291 = vmatpush.xpose.msra.mxu0 0.0
    %292 = vmatpush.xpose.msra.mxu0 0.0
    %293 = vmatpush.xpose.msra.mxu0 0.0
    %294 = vmatpush.xpose.msra.mxu0 %v158
    %295 = vmatpush.xpose.msra.mxu0 %v156
    %296 = vmatmul.f32.gmra.mxu0 %v275
    %v297 = vpop.f32.mrf.mxu0
    %v298 = vadd.f32 %v138, %v297
    %299 = vmatmul.f32.gmra.mxu0 %v278
    %v300 = vpop.f32.mrf.mxu0
    %v301 = vadd.f32 %v139, %v300
    %302 = vdwg.mxu0
    %v303 = vsel %vm183, %v298, -inf
    %304 = vmax.xlane.f32.xlu0 %v303
    %v305 = vpop.xlane.xlu0 %304
    %v306 = vsel %vm183, %v301, -inf
    %307 = vmax.xlane.f32.xlu0 %v306
    %v308 = vpop.xlane.xlu0 %307
    %v309 = vsub.f32 %v298, %v305
    %v310 = vsub.f32 %v301, %v308
    %v311 = vmul.f32 %v309, 1.442695
    %v312 = vpow.pop %v311
    %v313 = vmul.f32 %v310, 1.442695
    %v314 = vpow.pop %v313
    %v315 = vsel %vm183, %v312, 0.0
    %316 = vadd.xlane.f32.xlu0 %v315
    %v317 = vpop.xlane.xlu0 %316
    %v318 = vsel %vm183, %v314, 0.0
    %319 = vadd.xlane.f32.xlu0 %v318
    %v320 = vpop.xlane.xlu0 %319
    %v321 = vrcp.pop %v317
    %v322 = vmul.f32 %v317, %v321
    %v323 = vsub.f32 1.0, %v322
    %v324 = vmul.f32 %v321, %v323
    %v325 = vadd.f32 %v321, %v324
    %vm326 = vweird.f32 %v317
    %vm327 = vweird.f32 %v321
    %vm328 = vmor %vm326, %vm327
    %v329 = vsel %vm328, %v321, %v325
    %v330 = vand.u32 2147483647, %v317
    %vm331 = vcmp.eq.f32.partialorder %v330, 8.507059e+37
    %v332 = vand.u32 %v317, 2147483648
    %v333 = vor.u32 1.1754944e-38, %v332
    %v334 = vsel %vm331, %v333, %v329
    %v335 = vmul.f32 %v312, %v334
    %v336 = vrcp.pop %v320
    %v337 = vmul.f32 %v320, %v336
    %v338 = vsub.f32 1.0, %v337
    %v339 = vmul.f32 %v336, %v338
    %v340 = vadd.f32 %v336, %v339
    %vm341 = vweird.f32 %v320
    %vm342 = vweird.f32 %v336
    %vm343 = vmor %vm341, %vm342
    %v344 = vsel %vm343, %v336, %v340
    %v345 = vand.u32 2147483647, %v320
    %vm346 = vcmp.eq.f32.partialorder %v345, 8.507059e+37
    %v347 = vand.u32 %v320, 2147483648
    %v348 = vor.u32 1.1754944e-38, %v347
    %v349 = vsel %vm346, %v348, %v344
    %v350 = vmul.f32 %v314, %v349
    %v352 = vsel %vm183, %v335, 0
    %v355 = vsel %vm183, %v350, 0
    %357 = vmatpush.msra.mxu0 0.0
    %358 = vmatpush.msra.mxu0 0.0
    %359 = vmatpush.msra.mxu0 0.0
    %360 = vmatpush.msra.mxu0 0.0
    %361 = vmatpush.msra.mxu0 0.0
    %362 = vmatpush.msra.mxu0 0.0
    %363 = vmatpush.msra.mxu0 0.0
    %364 = vmatpush.msra.mxu0 0.0
    %365 = vmatpush.msra.mxu0 0.0
    %366 = vmatpush.msra.mxu0 0.0
    %367 = vmatpush.msra.mxu0 0.0
    %368 = vmatpush.msra.mxu0 0.0
    %369 = vmatpush.msra.mxu0 0.0
    %370 = vmatpush.msra.mxu0 0.0
    %371 = vmatpush.msra.mxu0 %v235
    %372 = vmatpush.msra.mxu0 %v233
    %373 = vmatmul.f32.gmra.mxu0 %v352
    %v374 = vpop.f32.mrf.mxu0
    %v375 = vadd.f32 0.0, %v374
    %376 = vmatmul.f32.gmra.mxu0 %v355
    %v377 = vpop.f32.mrf.mxu0
    %v378 = vadd.f32 0.0, %v377
    %379 = vdwg.mxu0
    %v380 = vmul.f32 %v375, %v271
    %v381 = vmul.f32 %v378, %v271
    %v382 = vadd.f32 %v269, %v380
    %v383 = vadd.f32 %v270, %v381
    %v384 = vperm.slane %v140, 2
    %v385 = vmul.f32 %v136, %v384
    %v386 = vmul.f32 %v137, %v384
    %v388 = vsel %vm106, %v385, 0
    %v391 = vsel %vm106, %v386, 0
    %393 = vmatpush.xpose.msra.mxu0 0.0
    %394 = vmatpush.xpose.msra.mxu0 0.0
    %395 = vmatpush.xpose.msra.mxu0 0.0
    %396 = vmatpush.xpose.msra.mxu0 0.0
    %397 = vmatpush.xpose.msra.mxu0 0.0
    %398 = vmatpush.xpose.msra.mxu0 0.0
    %399 = vmatpush.xpose.msra.mxu0 0.0
    %400 = vmatpush.xpose.msra.mxu0 0.0
    %401 = vmatpush.xpose.msra.mxu0 0.0
    %402 = vmatpush.xpose.msra.mxu0 0.0
    %403 = vmatpush.xpose.msra.mxu0 0.0
    %404 = vmatpush.xpose.msra.mxu0 0.0
    %405 = vmatpush.xpose.msra.mxu0 0.0
    %406 = vmatpush.xpose.msra.mxu0 0.0
    %407 = vmatpush.xpose.msra.mxu0 %v158
    %408 = vmatpush.xpose.msra.mxu0 %v156
    %409 = vmatmul.f32.gmra.mxu0 %v388
    %v410 = vpop.f32.mrf.mxu0
    %v411 = vadd.f32 %v138, %v410
    %412 = vmatmul.f32.gmra.mxu0 %v391
    %v413 = vpop.f32.mrf.mxu0
    %v414 = vadd.f32 %v139, %v413
    %415 = vdwg.mxu0
    %v416 = vsel %vm183, %v411, -inf
    %417 = vmax.xlane.f32.xlu0 %v416
    %v418 = vpop.xlane.xlu0 %417
    %v419 = vsel %vm183, %v414, -inf
    %420 = vmax.xlane.f32.xlu0 %v419
    %v421 = vpop.xlane.xlu0 %420
    %v422 = vsub.f32 %v411, %v418
    %v423 = vsub.f32 %v414, %v421
    %v424 = vmul.f32 %v422, 1.442695
    %v425 = vpow.pop %v424
    %v426 = vmul.f32 %v423, 1.442695
    %v427 = vpow.pop %v426
    %v428 = vsel %vm183, %v425, 0.0
    %429 = vadd.xlane.f32.xlu0 %v428
    %v430 = vpop.xlane.xlu0 %429
    %v431 = vsel %vm183, %v427, 0.0
    %432 = vadd.xlane.f32.xlu0 %v431
    %v433 = vpop.xlane.xlu0 %432
    %v434 = vrcp.pop %v430
    %v435 = vmul.f32 %v430, %v434
    %v436 = vsub.f32 1.0, %v435
    %v437 = vmul.f32 %v434, %v436
    %v438 = vadd.f32 %v434, %v437
    %vm439 = vweird.f32 %v430
    %vm440 = vweird.f32 %v434
    %vm441 = vmor %vm439, %vm440
    %v442 = vsel %vm441, %v434, %v438
    %v443 = vand.u32 2147483647, %v430
    %vm444 = vcmp.eq.f32.partialorder %v443, 8.507059e+37
    %v445 = vand.u32 %v430, 2147483648
    %v446 = vor.u32 1.1754944e-38, %v445
    %v447 = vsel %vm444, %v446, %v442
    %v448 = vmul.f32 %v425, %v447
    %v449 = vrcp.pop %v433
    %v450 = vmul.f32 %v433, %v449
    %v451 = vsub.f32 1.0, %v450
    %v452 = vmul.f32 %v449, %v451
    %v453 = vadd.f32 %v449, %v452
    %vm454 = vweird.f32 %v433
    %vm455 = vweird.f32 %v449
    %vm456 = vmor %vm454, %vm455
    %v457 = vsel %vm456, %v449, %v453
    %v458 = vand.u32 2147483647, %v433
    %vm459 = vcmp.eq.f32.partialorder %v458, 8.507059e+37
    %v460 = vand.u32 %v433, 2147483648
    %v461 = vor.u32 1.1754944e-38, %v460
    %v462 = vsel %vm459, %v461, %v457
    %v463 = vmul.f32 %v427, %v462
    %v465 = vsel %vm183, %v448, 0
    %v468 = vsel %vm183, %v463, 0
    %470 = vmatpush.msra.mxu0 0.0
    %471 = vmatpush.msra.mxu0 0.0
    %472 = vmatpush.msra.mxu0 0.0
    %473 = vmatpush.msra.mxu0 0.0
    %474 = vmatpush.msra.mxu0 0.0
    %475 = vmatpush.msra.mxu0 0.0
    %476 = vmatpush.msra.mxu0 0.0
    %477 = vmatpush.msra.mxu0 0.0
    %478 = vmatpush.msra.mxu0 0.0
    %479 = vmatpush.msra.mxu0 0.0
    %480 = vmatpush.msra.mxu0 0.0
    %481 = vmatpush.msra.mxu0 0.0
    %482 = vmatpush.msra.mxu0 0.0
    %483 = vmatpush.msra.mxu0 0.0
    %484 = vmatpush.msra.mxu0 %v235
    %485 = vmatpush.msra.mxu0 %v233
    %486 = vmatmul.f32.gmra.mxu0 %v465
    %v487 = vpop.f32.mrf.mxu0
    %v488 = vadd.f32 0.0, %v487
    %489 = vmatmul.f32.gmra.mxu0 %v468
    %v490 = vpop.f32.mrf.mxu0
    %v491 = vadd.f32 0.0, %v490
    %492 = vdwg.mxu0
    %v493 = vmul.f32 %v488, %v384
    %v494 = vmul.f32 %v491, %v384
    %v495 = vadd.f32 %v382, %v493
    %v496 = vadd.f32 %v383, %v494
    %v497 = vperm.slane %v140, 3
    %v498 = vmul.f32 %v136, %v497
    %v499 = vmul.f32 %v137, %v497
    %v501 = vsel %vm106, %v498, 0
    %v504 = vsel %vm106, %v499, 0
    %506 = vmatpush.xpose.msra.mxu0 0.0
    %507 = vmatpush.xpose.msra.mxu0 0.0
    %508 = vmatpush.xpose.msra.mxu0 0.0
    %509 = vmatpush.xpose.msra.mxu0 0.0
    %510 = vmatpush.xpose.msra.mxu0 0.0
    %511 = vmatpush.xpose.msra.mxu0 0.0
    %512 = vmatpush.xpose.msra.mxu0 0.0
    %513 = vmatpush.xpose.msra.mxu0 0.0
    %514 = vmatpush.xpose.msra.mxu0 0.0
    %515 = vmatpush.xpose.msra.mxu0 0.0
    %516 = vmatpush.xpose.msra.mxu0 0.0
    %517 = vmatpush.xpose.msra.mxu0 0.0
    %518 = vmatpush.xpose.msra.mxu0 0.0
    %519 = vmatpush.xpose.msra.mxu0 0.0
    %520 = vmatpush.xpose.msra.mxu0 %v158
    %521 = vmatpush.xpose.msra.mxu0 %v156
    %522 = vmatmul.f32.gmra.mxu0 %v501
    %v523 = vpop.f32.mrf.mxu0
    %v524 = vadd.f32 %v138, %v523
    %525 = vmatmul.f32.gmra.mxu0 %v504
    %v526 = vpop.f32.mrf.mxu0
    %v527 = vadd.f32 %v139, %v526
    %528 = vdwg.mxu0
    %v529 = vsel %vm183, %v524, -inf
    %530 = vmax.xlane.f32.xlu0 %v529
    %v531 = vpop.xlane.xlu0 %530
    %v532 = vsel %vm183, %v527, -inf
    %533 = vmax.xlane.f32.xlu0 %v532
    %v534 = vpop.xlane.xlu0 %533
    %v535 = vsub.f32 %v524, %v531
    %v536 = vsub.f32 %v527, %v534
    %v537 = vmul.f32 %v535, 1.442695
    %v538 = vpow.pop %v537
    %v539 = vmul.f32 %v536, 1.442695
    %v540 = vpow.pop %v539
    %v541 = vsel %vm183, %v538, 0.0
    %542 = vadd.xlane.f32.xlu0 %v541
    %v543 = vpop.xlane.xlu0 %542
    %v544 = vsel %vm183, %v540, 0.0
    %545 = vadd.xlane.f32.xlu0 %v544
    %v546 = vpop.xlane.xlu0 %545
    %v547 = vrcp.pop %v543
    %v548 = vmul.f32 %v543, %v547
    %v549 = vsub.f32 1.0, %v548
    %v550 = vmul.f32 %v547, %v549
    %v551 = vadd.f32 %v547, %v550
    %vm552 = vweird.f32 %v543
    %vm553 = vweird.f32 %v547
    %vm554 = vmor %vm552, %vm553
    %v555 = vsel %vm554, %v547, %v551
    %v556 = vand.u32 2147483647, %v543
    %vm557 = vcmp.eq.f32.partialorder %v556, 8.507059e+37
    %v558 = vand.u32 %v543, 2147483648
    %v559 = vor.u32 1.1754944e-38, %v558
    %v560 = vsel %vm557, %v559, %v555
    %v561 = vmul.f32 %v538, %v560
    %v562 = vrcp.pop %v546
    %v563 = vmul.f32 %v546, %v562
    %v564 = vsub.f32 1.0, %v563
    %v565 = vmul.f32 %v562, %v564
    %v566 = vadd.f32 %v562, %v565
    %vm567 = vweird.f32 %v546
    %vm568 = vweird.f32 %v562
    %vm569 = vmor %vm567, %vm568
    %v570 = vsel %vm569, %v562, %v566
    %v571 = vand.u32 2147483647, %v546
    %vm572 = vcmp.eq.f32.partialorder %v571, 8.507059e+37
    %v573 = vand.u32 %v546, 2147483648
    %v574 = vor.u32 1.1754944e-38, %v573
    %v575 = vsel %vm572, %v574, %v570
    %v576 = vmul.f32 %v540, %v575
    %v578 = vsel %vm183, %v561, 0
    %v581 = vsel %vm183, %v576, 0
    %583 = vmatpush.msra.mxu0 0.0
    %584 = vmatpush.msra.mxu0 0.0
    %585 = vmatpush.msra.mxu0 0.0
    %586 = vmatpush.msra.mxu0 0.0
    %587 = vmatpush.msra.mxu0 0.0
    %588 = vmatpush.msra.mxu0 0.0
    %589 = vmatpush.msra.mxu0 0.0
    %590 = vmatpush.msra.mxu0 0.0
    %591 = vmatpush.msra.mxu0 0.0
    %592 = vmatpush.msra.mxu0 0.0
    %593 = vmatpush.msra.mxu0 0.0
    %594 = vmatpush.msra.mxu0 0.0
    %595 = vmatpush.msra.mxu0 0.0
    %596 = vmatpush.msra.mxu0 0.0
    %597 = vmatpush.msra.mxu0 %v235
    %598 = vmatpush.msra.mxu0 %v233
    %599 = vmatmul.f32.gmra.mxu0 %v578
    %v600 = vpop.f32.mrf.mxu0
    %v601 = vadd.f32 0.0, %v600
    %602 = vmatmul.f32.gmra.mxu0 %v581
    %v603 = vpop.f32.mrf.mxu0
    %v604 = vadd.f32 0.0, %v603
    %605 = vdwg.mxu0
    %v606 = vmul.f32 %v601, %v497
    %v607 = vmul.f32 %v604, %v497
    %v608 = vadd.f32 %v495, %v606
    %v609 = vadd.f32 %v496, %v607
    %v610 = vld [vmem:[%s5] sm:$0xff]
    %v611 = vld [vmem:[%s5 + $0x8] sm:$0xff]
    %v612 = vld [vmem:[%s5 + $0x10] sm:$0xff]
    %v613 = vld [vmem:[%s5 + $0x18] sm:$0xff]
    %v614 = vld [vmem:[%s6] sm:$0x1]
    %v616 = vperm.slane %v614, 0
    %v619 = vsel %vm106, %v608, 0
    %v622 = vsel %vm106, %v609, 0
    %624 = vmatpush.msra.mxu0 0.0
    %625 = vmatpush.msra.mxu0 0.0
    %626 = vmatpush.msra.mxu0 0.0
    %627 = vmatpush.msra.mxu0 0.0
    %628 = vmatpush.msra.mxu0 0.0
    %629 = vmatpush.msra.mxu0 0.0
    %630 = vmatpush.msra.mxu0 0.0
    %631 = vmatpush.msra.mxu0 0.0
    %632 = vmatpush.msra.mxu0 0.0
    %633 = vmatpush.msra.mxu0 0.0
    %634 = vmatpush.msra.mxu0 0.0
    %635 = vmatpush.msra.mxu0 0.0
    %636 = vmatpush.msra.mxu0 %v613
    %637 = vmatpush.msra.mxu0 %v612
    %638 = vmatpush.msra.mxu0 %v611
    %639 = vmatpush.msra.mxu0 %v610
    %640 = vmatmul.f32.gmra.mxu0 %v619
    %v641 = vpop.f32.mrf.mxu0
    %v642 = vadd.f32 %v616, %v641
    %643 = vmatmul.f32.gmra.mxu0 %v622
    %v644 = vpop.f32.mrf.mxu0
    %v645 = vadd.f32 %v616, %v644
    %646 = vdwg.mxu0
    %v647 = vadd.f32 %v96, %v642
    %v648 = vadd.f32 %v97, %v645
    %v649 = vld [vmem:[%s7] sm:$0x1]
    %v650 = vld [vmem:[%s8] sm:$0x1]
    %v651 = vsel %vm106, %v647, 0.0
    %652 = vadd.xlane.f32.xlu0 %v651
    %v653 = vpop.xlane.xlu0 %652
    %v654 = vsel %vm106, %v648, 0.0
    %655 = vadd.xlane.f32.xlu0 %v654
    %v656 = vpop.xlane.xlu0 %655
    %v657 = vrcp.pop 32.0
    %v658 = vmul.f32 32.0, %v657
    %v659 = vsub.f32 1.0, %v658
    %v660 = vmul.f32 %v657, %v659
    %v661 = vadd.f32 %v657, %v660
    %vm662 = vweird.f32 %v657
    %v663 = vsel %vm662, %v657, %v661
    %v664 = vmul.f32 %v653, %v663
    %v665 = vmul.f32 %v656, %v663
    %v666 = vsub.f32 %v647, %v664
    %v667 = vsub.f32 %v648, %v665
    %v668 = vmul.f32 %v666, %v666
    %v669 = vmul.f32 %v667, %v667
    %v670 = vsel %vm106, %v668, 0.0
    %671 = vadd.xlane.f32.xlu0 %v670
    %v672 = vpop.xlane.xlu0 %671
    %v673 = vsel %vm106, %v669, 0.0
    %674 = vadd.xlane.f32.xlu0 %v673
    %v675 = vpop.xlane.xlu0 %674
    %v676 = vmul.f32 %v672, %v663
    %v677 = vmul.f32 %v675, %v663
    %v678 = vadd.f32 %v676, 1e-05
    %v679 = vadd.f32 %v677, 1e-05
    %v680 = vrsqrt.pop %v678
    %v681 = vmul.f32 %v680, %v678
    %v682 = vmul.f32 %v681, %v680
    %v683 = vmul.f32 0.5, %v682
    %v684 = vsub.f32 1.5, %v683
    %v685 = vmul.f32 %v680, %v684
    %vm686 = vweird.f32 %v678
    %vm687 = vweird.f32 %v680
    %vm688 = vmor %vm686, %vm687
    %v689 = vsel %vm688, %v680, %v685
    %v690 = vrsqrt.pop %v679
    %v691 = vmul.f32 %v690, %v679
    %v692 = vmul.f32 %v691, %v690
    %v693 = vmul.f32 0.5, %v692
    %v694 = vsub.f32 1.5, %v693
    %v695 = vmul.f32 %v690, %v694
    %vm696 = vweird.f32 %v679
    %vm697 = vweird.f32 %v690
    %vm698 = vmor %vm696, %vm697
    %v699 = vsel %vm698, %v690, %v695
    %v700 = vmul.f32 %v666, %v689
    %v701 = vmul.f32 %v667, %v699
    %v703 = vperm.slane %v649, 0
    %v705 = vmul.f32 %v700, %v703
    %v706 = vmul.f32 %v701, %v703
    %v708 = vperm.slane %v650, 0
    %v710 = vadd.f32 %v705, %v708
    %v711 = vadd.f32 %v706, %v708
    %v712 = vld [vmem:[%s9] sm:$0xff]
    %v713 = vld [vmem:[%s9 + $0x8] sm:$0xff]
    %v714 = vld [vmem:[%s9 + $0x10] sm:$0xff]
    %v715 = vld [vmem:[%s9 + $0x18] sm:$0xff]
    %v716 = vld [vmem:[%s10] sm:$0x1]
    %v718 = vperm.slane %v716, 0
    %v721 = vsel %vm106, %v710, 0
    %v724 = vsel %vm106, %v711, 0
    %726 = vmatpush.msra.mxu0 0.0
    %727 = vmatpush.msra.mxu0 0.0
    %728 = vmatpush.msra.mxu0 0.0
    %729 = vmatpush.msra.mxu0 0.0
    %730 = vmatpush.msra.mxu0 0.0
    %731 = vmatpush.msra.mxu0 0.0
    %732 = vmatpush.msra.mxu0 0.0
    %733 = vmatpush.msra.mxu0 0.0
    %734 = vmatpush.msra.mxu0 0.0
    %735 = vmatpush.msra.mxu0 0.0
    %736 = vmatpush.msra.mxu0 0.0
    %737 = vmatpush.msra.mxu0 0.0
    %738 = vmatpush.msra.mxu0 %v715
    %739 = vmatpush.msra.mxu0 %v714
    %740 = vmatpush.msra.mxu0 %v713
    %741 = vmatpush.msra.mxu0 %v712
    %742 = vmatmul.f32.gmra.mxu0 %v721
    %v743 = vpop.f32.mrf.mxu0
    %v744 = vadd.f32 %v718, %v743
    %745 = vmatmul.f32.gmra.mxu0 %v724
    %v746 = vpop.f32.mrf.mxu0
    %v747 = vadd.f32 %v718, %v746
    %748 = vdwg.mxu0
    %v749 = vmax.f32 %v744, 0.0
    %v750 = vmax.f32 %v747, 0.0
    %v751 = vld [vmem:[%s11] sm:$0xff]
    %v752 = vld [vmem:[%s11 + $0x8] sm:$0xff]
    %v753 = vld [vmem:[%s11 + $0x10] sm:$0xff]
    %v754 = vld [vmem:[%s11 + $0x18] sm:$0xff]
    %v755 = vld [vmem:[%s11 + $0x20] sm:$0xff]
    %v756 = vld [vmem:[%s11 + $0x28] sm:$0xff]
    %v757 = vld [vmem:[%s11 + $0x30] sm:$0xff]
    %v758 = vld [vmem:[%s11 + $0x38] sm:$0xff]
    %v759 = vld [vmem:[%s12] sm:$0x1]
    %v761 = vperm.slane %v759, 0
    %vm763 = vcmask 523264
    %v765 = vsel %vm763, %v749, 0
    %v768 = vsel %vm763, %v750, 0
    %770 = vmatpush.msra.mxu0 0.0
    %771 = vmatpush.msra.mxu0 0.0
    %772 = vmatpush.msra.mxu0 0.0
    %773 = vmatpush.msra.mxu0 0.0
    %774 = vmatpush.msra.mxu0 0.0
    %775 = vmatpush.msra.mxu0 0.0
    %776 = vmatpush.msra.mxu0 0.0
    %777 = vmatpush.msra.mxu0 0.0
    %778 = vmatpush.msra.mxu0 %v758
    %779 = vmatpush.msra.mxu0 %v757
    %780 = vmatpush.msra.mxu0 %v756
    %781 = vmatpush.msra.mxu0 %v755
    %782 = vmatpush.msra.mxu0 %v754
    %783 = vmatpush.msra.mxu0 %v753
    %784 = vmatpush.msra.mxu0 %v752
    %785 = vmatpush.msra.mxu0 %v751
    %786 = vmatmul.f32.gmra.mxu0 %v765
    %v787 = vpop.f32.mrf.mxu0
    %v788 = vadd.f32 %v761, %v787
    %789 = vmatmul.f32.gmra.mxu0 %v768
    %v790 = vpop.f32.mrf.mxu0
    %v791 = vadd.f32 %v761, %v790
    %792 = vdwg.mxu0
    %v793 = vadd.f32 %v710, %v788
    %v794 = vadd.f32 %v711, %v791
    %v795 = vld [vmem:[%s13] sm:$0x1]
    %v796 = vld [vmem:[%s14] sm:$0x1]
    %v797 = vsel %vm106, %v793, 0.0
    %798 = vadd.xlane.f32.xlu0 %v797
    %v799 = vpop.xlane.xlu0 %798
    %v800 = vsel %vm106, %v794, 0.0
    %801 = vadd.xlane.f32.xlu0 %v800
    %v802 = vpop.xlane.xlu0 %801
    %v803 = vmul.f32 %v799, %v663
    %v804 = vmul.f32 %v802, %v663
    %v805 = vsub.f32 %v793, %v803
    %v806 = vsub.f32 %v794, %v804
    %v807 = vmul.f32 %v805, %v805
    %v808 = vmul.f32 %v806, %v806
    %v809 = vsel %vm106, %v807, 0.0
    %810 = vadd.xlane.f32.xlu0 %v809
    %v811 = vpop.xlane.xlu0 %810
    %v812 = vsel %vm106, %v808, 0.0
    %813 = vadd.xlane.f32.xlu0 %v812
    %v814 = vpop.xlane.xlu0 %813
    %v815 = vmul.f32 %v811, %v663
    %v816 = vmul.f32 %v814, %v663
    %v817 = vadd.f32 %v815, 1e-05
    %v818 = vadd.f32 %v816, 1e-05
    %v819 = vrsqrt.pop %v817
    %v820 = vmul.f32 %v819, %v817
    %v821 = vmul.f32 %v820, %v819
    %v822 = vmul.f32 0.5, %v821
    %v823 = vsub.f32 1.5, %v822
    %v824 = vmul.f32 %v819, %v823
    %vm825 = vweird.f32 %v817
    %vm826 = vweird.f32 %v819
    %vm827 = vmor %vm825, %vm826
    %v828 = vsel %vm827, %v819, %v824
    %v829 = vrsqrt.pop %v818
    %v830 = vmul.f32 %v829, %v818
    %v831 = vmul.f32 %v830, %v829
    %v832 = vmul.f32 0.5, %v831
    %v833 = vsub.f32 1.5, %v832
    %v834 = vmul.f32 %v829, %v833
    %vm835 = vweird.f32 %v818
    %vm836 = vweird.f32 %v829
    %vm837 = vmor %vm835, %vm836
    %v838 = vsel %vm837, %v829, %v834
    %v839 = vmul.f32 %v805, %v828
    %v840 = vmul.f32 %v806, %v838
    %v842 = vperm.slane %v795, 0
    %v844 = vmul.f32 %v839, %v842
    %v845 = vmul.f32 %v840, %v842
    %v847 = vperm.slane %v796, 0
    %v849 = vadd.f32 %v844, %v847
    %v850 = vadd.f32 %v845, %v847
    %851 = vst.msk [vmem:[#allocation8] sm:$0xff] %vm106, %v849
    %852 = vst.msk [vmem:[#allocation8 + $0x8] sm:$0xff] %vm106, %v850
    // Predicated region
    $region74: #{tpu_custom_call.1} parent=1 // pred_check
      _
    $region75: #{tpu_custom_call.1} parent=1 // pred_check_branch
      %854 = sbr.rel (0) target = $region77
    $region76: #{tpu_custom_call.1} parent=1 // pred_region
      %856 = vsyncadd [#allocation4], 0
      %s857 = sshll.u32 [#allocation8], 4
      %s858 = int_to_ptr.vmem [resolvable:$true] %s857
      %s859 = sshll.u32 %s15, 4
      %s860 = int_to_ptr.hbm [resolvable:$true] %s859
      %865 = dma.vmem_to_hbm [thread:$0]  %s858, 256, %s860, [#allocation4], 128, 128, 8
    $region77: #{tpu_custom_call.1} parent=1 // pred_fallthru
      _
    // Predicated region
    $region78: #{tpu_custom_call.1} parent=1 // pred_check
      _
    $region79: #{tpu_custom_call.1} parent=1 // pred_check_branch
      %867 = sbr.rel (0) target = $region81
    $region80: #{tpu_custom_call.1} parent=1 // pred_region
      %869 = dma.done [#allocation4], 256
    $region81: #{tpu_custom_call.1} parent=1 // pred_fallthru
      _
    %870 = vsyncpa [#allocation3], 1
    %871 = vsyncpa [#allocation6], 1
    %872 = vsyncpa [#allocation4], 1

</llo_original>
